<compile_context>
chip_gen: v7x
topology: tpu7x:2x2x1
jax: 0.10.0
libtpu: 0.0.40
codegen_flags: <defaults>
</compile_context>

<pallas_src>
import jax
import jax.numpy as jnp
from jax.experimental import pallas as pl
from jax.experimental.pallas import tpu as pltpu


def _lr_kernel(off_ref, idx_ref, w_ref, bias_ref, out_ref):
    # off_ref : (F,)        int32  SMEM  -- per-field vocabulary offsets
    # idx_ref : (TB, F)     int32  VMEM  -- raw per-field indices for this batch tile
    # w_ref   : (1, Vp)     f32    VMEM  -- lane-major embedding table row (embed_dim == 1)
    # bias_ref: (1,)        f32    SMEM
    # out_ref : (1, 1, TB)  f32    VMEM  -- lane-dense output row for this batch tile
    idx = idx_ref[...]                                   # (TB, F)
    w_row = w_ref[...]                                   # (1, Vp), broadcasts over sublanes
    tb, num_fields = idx.shape
    vp = w_row.shape[1]

    # Hoisted once: lane iota reused by every field (JAX does not CSE broadcasts).
    lane = jax.lax.broadcasted_iota(jnp.int32, (tb, vp), 1)

    # Per-field offsets place each field in a DISJOINT lane range, so the F one-hot masks can
    # be OR-merged; the expensive select + XLU lane-reduction then runs once, not F times.
    hit = (idx[:, 0:1] + off_ref[0]) == lane             # (TB, Vp) VPU compare
    for f in range(1, num_fields):                       # F is tiny & static -> unrolled
        hit = jnp.logical_or(hit, (idx[:, f:f + 1] + off_ref[f]) == lane)

    acc = jnp.sum(jnp.where(hit, w_row, 0.0),            # single select + single lane reduce
                  axis=-1, keepdims=True)                # (TB, 1) f32
    res = jax.nn.sigmoid(acc + bias_ref[0])              # (TB, 1)

    # Lane-dense store: one small XLU transpose instead of TB masked 1-lane stores.
    out_ref[...] = jnp.transpose(res).reshape(1, 1, tb)


def _round_up(x, m):
    return ((x + m - 1) // m) * m


def logistic_regression_forward(x_idx, emb_table, bias, offsets, *, tb=512):
    """x_idx: (B, F) int per-field indices; emb_table: (V, 1) f32; bias: (1,); offsets: (F,)."""
    B, F = x_idx.shape
    V, embed_dim = emb_table.shape
    assert embed_dim == 1, "LogisticRegression formulation requires embed_dim == 1"

    # Lane-major, 128-lane-padded table row (zero pad lanes can never match a valid index).
    Vp = _round_up(V, 128)
    w_row = jnp.pad(emb_table[:, 0].astype(jnp.float32)[None, :], ((0, 0), (0, Vp - V)))

    # Batch tiling: TB a multiple of 128 (lane-dense output), large by default, and at least
    # two tiles whenever the batch allows so v7x megacore can shard the "parallel" axis.
    tb = max(128, (min(int(tb), 2048) // 128) * 128)
    b_ceil = _round_up(B, 128)
    tb = min(tb, b_ceil)
    if b_ceil >= 2 * 128 and b_ceil // tb < 2:
        tb = _round_up(b_ceil // 2, 128)
    num_tiles = pl.cdiv(B, tb)
    B_pad = num_tiles * tb

    idx = x_idx.astype(jnp.int32)
    if B_pad != B:
        idx = jnp.pad(idx, ((0, B_pad - B), (0, 0)))     # padded rows sliced off below

    out = pl.pallas_call(
        _lr_kernel,
        out_shape=jax.ShapeDtypeStruct((num_tiles, 1, tb), jnp.float32),
        grid=(num_tiles,),
        in_specs=[
            pl.BlockSpec(memory_space=pltpu.SMEM),            # offsets (F,) -> SMEM scalars
            pl.BlockSpec((tb, F), lambda i: (i, 0)),          # per-tile indices
            pl.BlockSpec((1, Vp), lambda i: (0, 0)),          # table row, resident across tiles
            pl.BlockSpec(memory_space=pltpu.SMEM),            # bias (1,)
        ],
        out_specs=pl.BlockSpec((1, 1, tb), lambda i: (i, 0, 0)),
        compiler_params=pltpu.CompilerParams(
            dimension_semantics=("parallel",)),               # shard batch tiles (v7x megacore)
    )(offsets.astype(jnp.int32), idx, w_row, bias.astype(jnp.float32))

    return out.reshape(B_pad, 1)[:B]


if __name__ == "__main__":
    key = jax.random.PRNGKey(0)

    # Small synthetic config: 4 categorical fields with these vocabulary sizes.
    feature_nums = (10, 12, 8, 10)
    F = len(feature_nums)
    V = int(sum(feature_nums))                   # total embedding rows
    B = 64                                       # batch

    offsets = jnp.asarray(
        (0,) + tuple(int(s) for s in jnp.cumsum(jnp.array(feature_nums))[:-1]),
        dtype=jnp.int32)

    k_emb, *k_idx = jax.random.split(key, 1 + F)
    # Deterministic parameters (shapes of nn.Embedding(V, 1) weight and zeros(1) bias).
    emb_table = jax.random.normal(k_emb, (V, 1), dtype=jnp.float32) * 0.01
    bias = jnp.zeros((1,), dtype=jnp.float32)

    # Deterministic per-field indices, each within its own vocab size.
    cols = [jax.random.randint(k_idx[f], (B, 1), 0, feature_nums[f], dtype=jnp.int32)
            for f in range(F)]
    x = jnp.concatenate(cols, axis=1)            # (B, F) int32

    out = logistic_regression_forward(x, emb_table, bias, offsets)
    out = jax.block_until_ready(out)

    # Pure-JAX reference check of the same math.
    ref = jax.nn.sigmoid(
        emb_table[(x + offsets[None, :]), 0].sum(axis=1, keepdims=True) + bias)
    assert out.shape == (B, 1)
    assert jnp.allclose(out, ref, atol=1e-6), (out, ref)

    print("KERNEL_OK")
</pallas_src>

<mosaic_0001>
module attributes {stable_mosaic.version = 11 : i64} {
  func.func @_lr_kernel(%arg0: i32, %arg1: memref<4xi32, #tpu.memory_space<smem>>, %arg2: memref<128x4xi32, #tpu.memory_space<vmem>>, %arg3: memref<1x128xf32, #tpu.memory_space<vmem>>, %arg4: memref<1xf32, #tpu.memory_space<smem>>, %arg5: memref<1x1x128xf32, #tpu.memory_space<vmem>>) attributes {dimension_semantics = [#tpu.dimension_semantics<parallel>], iteration_bounds = array<i64: 1>, scalar_prefetch = 0 : i64, scratch_operands = 0 : i64, tpu.core_type = #tpu.core_type<tc>, window_params = [{transform_indices = @transform_0, window_bounds = array<i64: 4>}, {transform_indices = @transform_1, window_bounds = array<i64: 128, 4>}, {pipeline_mode = #tpu.pipeline_mode<synchronous>, transform_indices = @transform_2, window_bounds = array<i64: 1, 128>}, {transform_indices = @transform_3, window_bounds = array<i64: 1>}, {transform_indices = @transform_4, window_bounds = array<i64: 1, 1, 128>}]} {
    %c0 = arith.constant 0 : index
    %c0_0 = arith.constant 0 : index
    %0 = vector.load %arg2[%c0, %c0_0] : memref<128x4xi32, #tpu.memory_space<vmem>>, vector<128x4xi32>
    %c0_1 = arith.constant 0 : index
    %c0_2 = arith.constant 0 : index
    %1 = vector.load %arg3[%c0_1, %c0_2] : memref<1x128xf32, #tpu.memory_space<vmem>>, vector<1x128xf32>
    %2 = tpu.iota {dimensions = array<i32: 1>} : vector<128x128xi32>
    %3 = vector.extract_strided_slice %0 {offsets = [0, 0], sizes = [128, 1], strides = [1, 1]} : vector<128x4xi32> to vector<128x1xi32>
    %c0_3 = arith.constant 0 : index
    %4 = memref.load %arg1[%c0_3] : memref<4xi32, #tpu.memory_space<smem>>
    %5 = vector.broadcast %4 : i32 to vector<128x1xi32>
    %6 = arith.addi %3, %5 : vector<128x1xi32>
    %7 = vector.broadcast %6 : vector<128x1xi32> to vector<128x128xi32>
    %8 = arith.cmpi eq, %7, %2 : vector<128x128xi32>
    %9 = vector.extract_strided_slice %0 {offsets = [0, 1], sizes = [128, 1], strides = [1, 1]} : vector<128x4xi32> to vector<128x1xi32>
    %c1 = arith.constant 1 : index
    %10 = memref.load %arg1[%c1] : memref<4xi32, #tpu.memory_space<smem>>
    %11 = vector.broadcast %10 : i32 to vector<128x1xi32>
    %12 = arith.addi %9, %11 : vector<128x1xi32>
    %13 = vector.broadcast %12 : vector<128x1xi32> to vector<128x128xi32>
    %14 = arith.cmpi eq, %13, %2 : vector<128x128xi32>
    %15 = arith.ori %8, %14 : vector<128x128xi1>
    %16 = vector.extract_strided_slice %0 {offsets = [0, 2], sizes = [128, 1], strides = [1, 1]} : vector<128x4xi32> to vector<128x1xi32>
    %c2 = arith.constant 2 : index
    %17 = memref.load %arg1[%c2] : memref<4xi32, #tpu.memory_space<smem>>
    %18 = vector.broadcast %17 : i32 to vector<128x1xi32>
    %19 = arith.addi %16, %18 : vector<128x1xi32>
    %20 = vector.broadcast %19 : vector<128x1xi32> to vector<128x128xi32>
    %21 = arith.cmpi eq, %20, %2 : vector<128x128xi32>
    %22 = arith.ori %15, %21 : vector<128x128xi1>
    %23 = vector.extract_strided_slice %0 {offsets = [0, 3], sizes = [128, 1], strides = [1, 1]} : vector<128x4xi32> to vector<128x1xi32>
    %c3 = arith.constant 3 : index
    %24 = memref.load %arg1[%c3] : memref<4xi32, #tpu.memory_space<smem>>
    %25 = vector.broadcast %24 : i32 to vector<128x1xi32>
    %26 = arith.addi %23, %25 : vector<128x1xi32>
    %27 = vector.broadcast %26 : vector<128x1xi32> to vector<128x128xi32>
    %28 = arith.cmpi eq, %27, %2 : vector<128x128xi32>
    %29 = arith.ori %22, %28 : vector<128x128xi1>
    %cst = arith.constant 0.000000e+00 : f32
    %30 = vector.shape_cast %1 : vector<1x128xf32> to vector<1x128xf32>
    %31 = vector.broadcast %30 : vector<1x128xf32> to vector<128x128xf32>
    %32 = vector.broadcast %cst : f32 to vector<128x128xf32>
    %33 = arith.select %29, %31, %32 : vector<128x128xi1>, vector<128x128xf32>
    %cst_4 = arith.constant dense<0.000000e+00> : vector<128xf32>
    %34 = vector.multi_reduction <add>, %33, %cst_4 [1] : vector<128x128xf32> to vector<128xf32>
    %35 = vector.shape_cast %34 : vector<128xf32> to vector<128x1xf32>
    %c0_5 = arith.constant 0 : index
    %36 = memref.load %arg4[%c0_5] : memref<1xf32, #tpu.memory_space<smem>>
    %37 = vector.broadcast %36 : f32 to vector<128x1xf32>
    %38 = arith.addf %35, %37 : vector<128x1xf32>
    %39 = arith.negf %38 : vector<128x1xf32>
    %40 = math.exp %39 : vector<128x1xf32>
    %cst_6 = arith.constant 1.000000e+00 : f32
    %41 = vector.broadcast %cst_6 : f32 to vector<128x1xf32>
    %42 = arith.addf %41, %40 : vector<128x1xf32>
    %43 = arith.divf %41, %42 : vector<128x1xf32>
    %44 = tpu.transpose %43, [1, 0] : vector<128x1xf32> -> vector<1x128xf32>
    %45 = vector.shape_cast %44 : vector<1x128xf32> to vector<1x1x128xf32>
    %c0_7 = arith.constant 0 : index
    %c0_8 = arith.constant 0 : index
    %c0_9 = arith.constant 0 : index
    %46 = vector.load %arg5[%c0_7, %c0_8, %c0_9] : memref<1x1x128xf32, #tpu.memory_space<vmem>>, vector<1x1x128xf32>
    tpu.vector_store %arg5[%c0_7, %c0_8, %c0_9], %45 {strides = array<i32>} : memref<1x1x128xf32, #tpu.memory_space<vmem>>, vector<1x1x128xf32>,
    return
  }
  func.func @transform_0(%arg0: i32) -> i32 {
    %c0_i32 = arith.constant 0 : i32
    %c0_i32_0 = arith.constant 0 : i32
    return %c0_i32 : i32
  }
  func.func @transform_1(%arg0: i32) -> (i32, i32) {
    %c0_i32 = arith.constant 0 : i32
    %c0_i32_0 = arith.constant 0 : i32
    return %arg0, %c0_i32 : i32, i32
  }
  func.func @transform_2(%arg0: i32) -> (i32, i32) {
    %c0_i32 = arith.constant 0 : i32
    %c0_i32_0 = arith.constant 0 : i32
    %c0_i32_1 = arith.constant 0 : i32
    return %c0_i32, %c0_i32_0 : i32, i32
  }
  func.func @transform_3(%arg0: i32) -> i32 {
    %c0_i32 = arith.constant 0 : i32
    %c0_i32_0 = arith.constant 0 : i32
    return %c0_i32 : i32
  }
  func.func @transform_4(%arg0: i32) -> (i32, i32, i32) {
    %c0_i32 = arith.constant 0 : i32
    %c0_i32_0 = arith.constant 0 : i32
    %c0_i32_1 = arith.constant 0 : i32
    return %arg0, %c0_i32, %c0_i32_0 : i32, i32, i32
  }
}

</mosaic_0001>

<llo_original>
// kernel: tpu_custom_call.1
$region0: #{tpu_custom_call.1}
  #allocation0 [shape = 'u32[]', space=smem, size = 0x4, offset = 0x4, fixed_abs, tag = 'smem constant byte address 0x4 - core index']
  #allocation1 [shape = 'u32[144,128]{1,0:T(1,128)}', space=vmem, size = 0x12000, scoped, tag = 'internal scratch']
  #allocation2 [shape = 'f32[1]{0:T(128)S(6)}', space=smem, size = 0x200, scoped, tag = 'scoped memory for tpu_custom_call.1']
  %s0 = inlined_call_operand.vmem [shape: s32[4], index: 0, kind: input, shape index: {}]
  %s1 = inlined_call_operand.vmem [shape: s32[128,4], index: 1, kind: input, shape index: {}]
  %s2 = inlined_call_operand.vmem [shape: f32[1,128], index: 2, kind: input, shape index: {}]
  %s3 = inlined_call_operand.<no memory space> [shape: f32[1], index: 3, kind: input, shape index: {}]
  %s4 = inlined_call_operand.hbm [shape: f32[1,1,128], index: 4, kind: output, shape index: {}]
  %s5 = sld [smem:[#allocation0]]
  $region30: #{tpu_custom_call.1} parent=0
    _
  %s7 = ssub.s32 1, %s5
  %s8 = scalar_select 0, %s7, %s5
  %9 = sst [smem:[#allocation2]] %s3
  $region1: #{tpu_custom_call.1} parent=0
    #allocation3 [shape = 'u8[512]{0}', space=smem, size = 0x200, scoped, tag = 'input window, operand 0, single buffered']
    #allocation4 [shape = 's32[1]{0}', space=sflag, size = 0x4, scoped, tag = 'scoped memory for tpu_custom_call.1']
    #allocation5 [shape = 's32[1]{0}', space=sflag, size = 0x4, scoped, tag = 'scoped memory for tpu_custom_call.1']
    #allocation6 [shape = 'u8[512]{0}', space=vmem, size = 0x400, scoped, tag = 'output window, operand 0, single buffered']
    %10 = vsyncpa [#allocation5], 0
    %11 = vsyncpa [#allocation4], 0
    // Predicated region
    $region2: #{tpu_custom_call.1} parent=1 // pred_check
      _
    $region3: #{tpu_custom_call.1} parent=1 // pred_check_branch
      %13 = sbr.rel (0) target = $region5
    $region4: #{tpu_custom_call.1} parent=1 // pred_region
      %s15 = ssub.s32 16, 16
      %16 = vsyncadd [#allocation5], %s15
      %s18 = sshll.u32 %s0, 4
      %s19 = int_to_ptr.vmem [resolvable:$true] %s18
      %21 = dma.vmem_to_smem %s19, 16, [#allocation3], [#allocation5]
    $region5: #{tpu_custom_call.1} parent=1 // pred_fallthru
      _
    // Predicated region
    $region6: #{tpu_custom_call.1} parent=1 // pred_check
      _
    $region7: #{tpu_custom_call.1} parent=1 // pred_check_branch
      %23 = sbr.rel (0) target = $region9
    $region8: #{tpu_custom_call.1} parent=1 // pred_region
      _
    $region9: #{tpu_custom_call.1} parent=1 // pred_fallthru
      _
    // Predicated region
    $region10: #{tpu_custom_call.1} parent=1 // pred_check
      _
    $region11: #{tpu_custom_call.1} parent=1 // pred_check_branch
      %25 = sbr.rel (0) target = $region13
    $region12: #{tpu_custom_call.1} parent=1 // pred_region
      _
    $region13: #{tpu_custom_call.1} parent=1 // pred_fallthru
      _
    // Predicated region
    $region14: #{tpu_custom_call.1} parent=1 // pred_check
      _
    $region15: #{tpu_custom_call.1} parent=1 // pred_check_branch
      %27 = sbr.rel (0) target = $region17
    $region16: #{tpu_custom_call.1} parent=1 // pred_region
      _
    $region17: #{tpu_custom_call.1} parent=1 // pred_fallthru
      _
    // Predicated region
    $region18: #{tpu_custom_call.1} parent=1 // pred_check
      _
    $region19: #{tpu_custom_call.1} parent=1 // pred_check_branch
      %29 = sbr.rel (0) target = $region21
    $region20: #{tpu_custom_call.1} parent=1 // pred_region
      %30 = dma.done [#allocation5], 16
    $region21: #{tpu_custom_call.1} parent=1 // pred_fallthru
      _
    %31 = sfence
    %v32 = vld [vmem:[%s1] sm:$0xff]
    %v33 = vld [vmem:[%s1 + $0x8] sm:$0xff]
    %v34 = vld [vmem:[%s1 + $0x10] sm:$0xff]
    %v35 = vld [vmem:[%s1 + $0x18] sm:$0xff]
    %v36 = vld [vmem:[%s1 + $0x20] sm:$0xff]
    %v37 = vld [vmem:[%s1 + $0x28] sm:$0xff]
    %v38 = vld [vmem:[%s1 + $0x30] sm:$0xff]
    %v39 = vld [vmem:[%s1 + $0x38] sm:$0xff]
    %v40 = vld [vmem:[%s1 + $0x40] sm:$0xff]
    %v41 = vld [vmem:[%s1 + $0x48] sm:$0xff]
    %v42 = vld [vmem:[%s1 + $0x50] sm:$0xff]
    %v43 = vld [vmem:[%s1 + $0x58] sm:$0xff]
    %v44 = vld [vmem:[%s1 + $0x60] sm:$0xff]
    %v45 = vld [vmem:[%s1 + $0x68] sm:$0xff]
    %v46 = vld [vmem:[%s1 + $0x70] sm:$0xff]
    %v47 = vld [vmem:[%s1 + $0x78] sm:$0xff]
    %v48 = vld [vmem:[%s2] sm:$0x1]
    %v49 = vlaneseq
    %v50 = vand.u32 %v49, 127
    %s51 = sld [smem:[#allocation3]]
    %v52 = vstv %s51
    %v53 = vadd.s32 %v32, %v52
    %v54 = vadd.s32 %v33, %v52
    %v55 = vadd.s32 %v34, %v52
    %v56 = vadd.s32 %v35, %v52
    %v57 = vadd.s32 %v36, %v52
    %v58 = vadd.s32 %v37, %v52
    %v59 = vadd.s32 %v38, %v52
    %v60 = vadd.s32 %v39, %v52
    %v61 = vadd.s32 %v40, %v52
    %v62 = vadd.s32 %v41, %v52
    %v63 = vadd.s32 %v42, %v52
    %v64 = vadd.s32 %v43, %v52
    %v65 = vadd.s32 %v44, %v52
    %v66 = vadd.s32 %v45, %v52
    %v67 = vadd.s32 %v46, %v52
    %v68 = vadd.s32 %v47, %v52
    %69 = vset.pattern.permute.xlu0 0
    %70 = vperm.xlu0 %69, %v53
    %v71 = vpop.permute.xlu0 %70
    %72 = vset.pattern.permute.xlu0 0
    %73 = vperm.xlu0 %72, %v54
    %v74 = vpop.permute.xlu0 %73
    %75 = vset.pattern.permute.xlu0 0
    %76 = vperm.xlu0 %75, %v55
    %v77 = vpop.permute.xlu0 %76
    %78 = vset.pattern.permute.xlu0 0
    %79 = vperm.xlu0 %78, %v56
    %v80 = vpop.permute.xlu0 %79
    %81 = vset.pattern.permute.xlu0 0
    %82 = vperm.xlu0 %81, %v57
    %v83 = vpop.permute.xlu0 %82
    %84 = vset.pattern.permute.xlu0 0
    %85 = vperm.xlu0 %84, %v58
    %v86 = vpop.permute.xlu0 %85
    %87 = vset.pattern.permute.xlu0 0
    %88 = vperm.xlu0 %87, %v59
    %v89 = vpop.permute.xlu0 %88
    %90 = vset.pattern.permute.xlu0 0
    %91 = vperm.xlu0 %90, %v60
    %v92 = vpop.permute.xlu0 %91
    %93 = vset.pattern.permute.xlu0 0
    %94 = vperm.xlu0 %93, %v61
    %v95 = vpop.permute.xlu0 %94
    %96 = vset.pattern.permute.xlu0 0
    %97 = vperm.xlu0 %96, %v62
    %v98 = vpop.permute.xlu0 %97
    %99 = vset.pattern.permute.xlu0 0
    %100 = vperm.xlu0 %99, %v63
    %v101 = vpop.permute.xlu0 %100
    %102 = vset.pattern.permute.xlu0 0
    %103 = vperm.xlu0 %102, %v64
    %v104 = vpop.permute.xlu0 %103
    %105 = vset.pattern.permute.xlu0 0
    %106 = vperm.xlu0 %105, %v65
    %v107 = vpop.permute.xlu0 %106
    %108 = vset.pattern.permute.xlu0 0
    %109 = vperm.xlu0 %108, %v66
    %v110 = vpop.permute.xlu0 %109
    %111 = vset.pattern.permute.xlu0 0
    %112 = vperm.xlu0 %111, %v67
    %v113 = vpop.permute.xlu0 %112
    %114 = vset.pattern.permute.xlu0 0
    %115 = vperm.xlu0 %114, %v68
    %v116 = vpop.permute.xlu0 %115
    %vm117 = vcmp.eq.s32.totalorder %v71, %v50
    %vm118 = vcmp.eq.s32.totalorder %v74, %v50
    %vm119 = vcmp.eq.s32.totalorder %v77, %v50
    %vm120 = vcmp.eq.s32.totalorder %v80, %v50
    %vm121 = vcmp.eq.s32.totalorder %v83, %v50
    %vm122 = vcmp.eq.s32.totalorder %v86, %v50
    %vm123 = vcmp.eq.s32.totalorder %v89, %v50
    %vm124 = vcmp.eq.s32.totalorder %v92, %v50
    %vm125 = vcmp.eq.s32.totalorder %v95, %v50
    %vm126 = vcmp.eq.s32.totalorder %v98, %v50
    %vm127 = vcmp.eq.s32.totalorder %v101, %v50
    %vm128 = vcmp.eq.s32.totalorder %v104, %v50
    %vm129 = vcmp.eq.s32.totalorder %v107, %v50
    %vm130 = vcmp.eq.s32.totalorder %v110, %v50
    %vm131 = vcmp.eq.s32.totalorder %v113, %v50
    %vm132 = vcmp.eq.s32.totalorder %v116, %v50
    %s133 = sld [smem:[#allocation3 + $0x1]]
    %v134 = vstv %s133
    %v135 = vadd.s32 %v32, %v134
    %v136 = vadd.s32 %v33, %v134
    %v137 = vadd.s32 %v34, %v134
    %v138 = vadd.s32 %v35, %v134
    %v139 = vadd.s32 %v36, %v134
    %v140 = vadd.s32 %v37, %v134
    %v141 = vadd.s32 %v38, %v134
    %v142 = vadd.s32 %v39, %v134
    %v143 = vadd.s32 %v40, %v134
    %v144 = vadd.s32 %v41, %v134
    %v145 = vadd.s32 %v42, %v134
    %v146 = vadd.s32 %v43, %v134
    %v147 = vadd.s32 %v44, %v134
    %v148 = vadd.s32 %v45, %v134
    %v149 = vadd.s32 %v46, %v134
    %v150 = vadd.s32 %v47, %v134
    %151 = vset.pattern.permute.xlu0 1
    %152 = vperm.xlu0 %151, %v135
    %v153 = vpop.permute.xlu0 %152
    %154 = vset.pattern.permute.xlu0 1
    %155 = vperm.xlu0 %154, %v136
    %v156 = vpop.permute.xlu0 %155
    %157 = vset.pattern.permute.xlu0 1
    %158 = vperm.xlu0 %157, %v137
    %v159 = vpop.permute.xlu0 %158
    %160 = vset.pattern.permute.xlu0 1
    %161 = vperm.xlu0 %160, %v138
    %v162 = vpop.permute.xlu0 %161
    %163 = vset.pattern.permute.xlu0 1
    %164 = vperm.xlu0 %163, %v139
    %v165 = vpop.permute.xlu0 %164
    %166 = vset.pattern.permute.xlu0 1
    %167 = vperm.xlu0 %166, %v140
    %v168 = vpop.permute.xlu0 %167
    %169 = vset.pattern.permute.xlu0 1
    %170 = vperm.xlu0 %169, %v141
    %v171 = vpop.permute.xlu0 %170
    %172 = vset.pattern.permute.xlu0 1
    %173 = vperm.xlu0 %172, %v142
    %v174 = vpop.permute.xlu0 %173
    %175 = vset.pattern.permute.xlu0 1
    %176 = vperm.xlu0 %175, %v143
    %v177 = vpop.permute.xlu0 %176
    %178 = vset.pattern.permute.xlu0 1
    %179 = vperm.xlu0 %178, %v144
    %v180 = vpop.permute.xlu0 %179
    %181 = vset.pattern.permute.xlu0 1
    %182 = vperm.xlu0 %181, %v145
    %v183 = vpop.permute.xlu0 %182
    %184 = vset.pattern.permute.xlu0 1
    %185 = vperm.xlu0 %184, %v146
    %v186 = vpop.permute.xlu0 %185
    %187 = vset.pattern.permute.xlu0 1
    %188 = vperm.xlu0 %187, %v147
    %v189 = vpop.permute.xlu0 %188
    %190 = vset.pattern.permute.xlu0 1
    %191 = vperm.xlu0 %190, %v148
    %v192 = vpop.permute.xlu0 %191
    %193 = vset.pattern.permute.xlu0 1
    %194 = vperm.xlu0 %193, %v149
    %v195 = vpop.permute.xlu0 %194
    %196 = vset.pattern.permute.xlu0 1
    %197 = vperm.xlu0 %196, %v150
    %v198 = vpop.permute.xlu0 %197
    %vm199 = vcmp.eq.s32.totalorder %v153, %v50
    %vm200 = vcmp.eq.s32.totalorder %v156, %v50
    %vm201 = vcmp.eq.s32.totalorder %v159, %v50
    %vm202 = vcmp.eq.s32.totalorder %v162, %v50
    %vm203 = vcmp.eq.s32.totalorder %v165, %v50
    %vm204 = vcmp.eq.s32.totalorder %v168, %v50
    %vm205 = vcmp.eq.s32.totalorder %v171, %v50
    %vm206 = vcmp.eq.s32.totalorder %v174, %v50
    %vm207 = vcmp.eq.s32.totalorder %v177, %v50
    %vm208 = vcmp.eq.s32.totalorder %v180, %v50
    %vm209 = vcmp.eq.s32.totalorder %v183, %v50
    %vm210 = vcmp.eq.s32.totalorder %v186, %v50
    %vm211 = vcmp.eq.s32.totalorder %v189, %v50
    %vm212 = vcmp.eq.s32.totalorder %v192, %v50
    %vm213 = vcmp.eq.s32.totalorder %v195, %v50
    %vm214 = vcmp.eq.s32.totalorder %v198, %v50
    %vm215 = vmor %vm117, %vm199
    %vm216 = vmor %vm118, %vm200
    %vm217 = vmor %vm119, %vm201
    %vm218 = vmor %vm120, %vm202
    %vm219 = vmor %vm121, %vm203
    %vm220 = vmor %vm122, %vm204
    %vm221 = vmor %vm123, %vm205
    %vm222 = vmor %vm124, %vm206
    %vm223 = vmor %vm125, %vm207
    %vm224 = vmor %vm126, %vm208
    %vm225 = vmor %vm127, %vm209
    %vm226 = vmor %vm128, %vm210
    %vm227 = vmor %vm129, %vm211
    %vm228 = vmor %vm130, %vm212
    %vm229 = vmor %vm131, %vm213
    %vm230 = vmor %vm132, %vm214
    %s231 = sld [smem:[#allocation3 + $0x2]]
    %v232 = vstv %s231
    %v233 = vadd.s32 %v32, %v232
    %v234 = vadd.s32 %v33, %v232
    %v235 = vadd.s32 %v34, %v232
    %v236 = vadd.s32 %v35, %v232
    %v237 = vadd.s32 %v36, %v232
    %v238 = vadd.s32 %v37, %v232
    %v239 = vadd.s32 %v38, %v232
    %v240 = vadd.s32 %v39, %v232
    %v241 = vadd.s32 %v40, %v232
    %v242 = vadd.s32 %v41, %v232
    %v243 = vadd.s32 %v42, %v232
    %v244 = vadd.s32 %v43, %v232
    %v245 = vadd.s32 %v44, %v232
    %v246 = vadd.s32 %v45, %v232
    %v247 = vadd.s32 %v46, %v232
    %v248 = vadd.s32 %v47, %v232
    %249 = vset.pattern.permute.xlu0 2
    %250 = vperm.xlu0 %249, %v233
    %v251 = vpop.permute.xlu0 %250
    %252 = vset.pattern.permute.xlu0 2
    %253 = vperm.xlu0 %252, %v234
    %v254 = vpop.permute.xlu0 %253
    %255 = vset.pattern.permute.xlu0 2
    %256 = vperm.xlu0 %255, %v235
    %v257 = vpop.permute.xlu0 %256
    %258 = vset.pattern.permute.xlu0 2
    %259 = vperm.xlu0 %258, %v236
    %v260 = vpop.permute.xlu0 %259
    %261 = vset.pattern.permute.xlu0 2
    %262 = vperm.xlu0 %261, %v237
    %v263 = vpop.permute.xlu0 %262
    %264 = vset.pattern.permute.xlu0 2
    %265 = vperm.xlu0 %264, %v238
    %v266 = vpop.permute.xlu0 %265
    %267 = vset.pattern.permute.xlu0 2
    %268 = vperm.xlu0 %267, %v239
    %v269 = vpop.permute.xlu0 %268
    %270 = vset.pattern.permute.xlu0 2
    %271 = vperm.xlu0 %270, %v240
    %v272 = vpop.permute.xlu0 %271
    %273 = vset.pattern.permute.xlu0 2
    %274 = vperm.xlu0 %273, %v241
    %v275 = vpop.permute.xlu0 %274
    %276 = vset.pattern.permute.xlu0 2
    %277 = vperm.xlu0 %276, %v242
    %v278 = vpop.permute.xlu0 %277
    %279 = vset.pattern.permute.xlu0 2
    %280 = vperm.xlu0 %279, %v243
    %v281 = vpop.permute.xlu0 %280
    %282 = vset.pattern.permute.xlu0 2
    %283 = vperm.xlu0 %282, %v244
    %v284 = vpop.permute.xlu0 %283
    %285 = vset.pattern.permute.xlu0 2
    %286 = vperm.xlu0 %285, %v245
    %v287 = vpop.permute.xlu0 %286
    %288 = vset.pattern.permute.xlu0 2
    %289 = vperm.xlu0 %288, %v246
    %v290 = vpop.permute.xlu0 %289
    %291 = vset.pattern.permute.xlu0 2
    %292 = vperm.xlu0 %291, %v247
    %v293 = vpop.permute.xlu0 %292
    %294 = vset.pattern.permute.xlu0 2
    %295 = vperm.xlu0 %294, %v248
    %v296 = vpop.permute.xlu0 %295
    %vm297 = vcmp.eq.s32.totalorder %v251, %v50
    %vm298 = vcmp.eq.s32.totalorder %v254, %v50
    %vm299 = vcmp.eq.s32.totalorder %v257, %v50
    %vm300 = vcmp.eq.s32.totalorder %v260, %v50
    %vm301 = vcmp.eq.s32.totalorder %v263, %v50
    %vm302 = vcmp.eq.s32.totalorder %v266, %v50
    %vm303 = vcmp.eq.s32.totalorder %v269, %v50
    %vm304 = vcmp.eq.s32.totalorder %v272, %v50
    %vm305 = vcmp.eq.s32.totalorder %v275, %v50
    %vm306 = vcmp.eq.s32.totalorder %v278, %v50
    %vm307 = vcmp.eq.s32.totalorder %v281, %v50
    %vm308 = vcmp.eq.s32.totalorder %v284, %v50
    %vm309 = vcmp.eq.s32.totalorder %v287, %v50
    %vm310 = vcmp.eq.s32.totalorder %v290, %v50
    %vm311 = vcmp.eq.s32.totalorder %v293, %v50
    %vm312 = vcmp.eq.s32.totalorder %v296, %v50
    %vm313 = vmor %vm215, %vm297
    %vm314 = vmor %vm216, %vm298
    %vm315 = vmor %vm217, %vm299
    %vm316 = vmor %vm218, %vm300
    %vm317 = vmor %vm219, %vm301
    %vm318 = vmor %vm220, %vm302
    %vm319 = vmor %vm221, %vm303
    %vm320 = vmor %vm222, %vm304
    %vm321 = vmor %vm223, %vm305
    %vm322 = vmor %vm224, %vm306
    %vm323 = vmor %vm225, %vm307
    %vm324 = vmor %vm226, %vm308
    %vm325 = vmor %vm227, %vm309
    %vm326 = vmor %vm228, %vm310
    %vm327 = vmor %vm229, %vm311
    %vm328 = vmor %vm230, %vm312
    %s329 = sld [smem:[#allocation3 + $0x3]]
    %v330 = vstv %s329
    %v331 = vadd.s32 %v32, %v330
    %v332 = vadd.s32 %v33, %v330
    %v333 = vadd.s32 %v34, %v330
    %v334 = vadd.s32 %v35, %v330
    %v335 = vadd.s32 %v36, %v330
    %v336 = vadd.s32 %v37, %v330
    %v337 = vadd.s32 %v38, %v330
    %v338 = vadd.s32 %v39, %v330
    %v339 = vadd.s32 %v40, %v330
    %v340 = vadd.s32 %v41, %v330
    %v341 = vadd.s32 %v42, %v330
    %v342 = vadd.s32 %v43, %v330
    %v343 = vadd.s32 %v44, %v330
    %v344 = vadd.s32 %v45, %v330
    %v345 = vadd.s32 %v46, %v330
    %v346 = vadd.s32 %v47, %v330
    %347 = vset.pattern.permute.xlu0 3
    %348 = vperm.xlu0 %347, %v331
    %v349 = vpop.permute.xlu0 %348
    %350 = vset.pattern.permute.xlu0 3
    %351 = vperm.xlu0 %350, %v332
    %v352 = vpop.permute.xlu0 %351
    %353 = vset.pattern.permute.xlu0 3
    %354 = vperm.xlu0 %353, %v333
    %v355 = vpop.permute.xlu0 %354
    %356 = vset.pattern.permute.xlu0 3
    %357 = vperm.xlu0 %356, %v334
    %v358 = vpop.permute.xlu0 %357
    %359 = vset.pattern.permute.xlu0 3
    %360 = vperm.xlu0 %359, %v335
    %v361 = vpop.permute.xlu0 %360
    %362 = vset.pattern.permute.xlu0 3
    %363 = vperm.xlu0 %362, %v336
    %v364 = vpop.permute.xlu0 %363
    %365 = vset.pattern.permute.xlu0 3
    %366 = vperm.xlu0 %365, %v337
    %v367 = vpop.permute.xlu0 %366
    %368 = vset.pattern.permute.xlu0 3
    %369 = vperm.xlu0 %368, %v338
    %v370 = vpop.permute.xlu0 %369
    %371 = vset.pattern.permute.xlu0 3
    %372 = vperm.xlu0 %371, %v339
    %v373 = vpop.permute.xlu0 %372
    %374 = vset.pattern.permute.xlu0 3
    %375 = vperm.xlu0 %374, %v340
    %v376 = vpop.permute.xlu0 %375
    %377 = vset.pattern.permute.xlu0 3
    %378 = vperm.xlu0 %377, %v341
    %v379 = vpop.permute.xlu0 %378
    %380 = vset.pattern.permute.xlu0 3
    %381 = vperm.xlu0 %380, %v342
    %v382 = vpop.permute.xlu0 %381
    %383 = vset.pattern.permute.xlu0 3
    %384 = vperm.xlu0 %383, %v343
    %v385 = vpop.permute.xlu0 %384
    %386 = vset.pattern.permute.xlu0 3
    %387 = vperm.xlu0 %386, %v344
    %v388 = vpop.permute.xlu0 %387
    %389 = vset.pattern.permute.xlu0 3
    %390 = vperm.xlu0 %389, %v345
    %v391 = vpop.permute.xlu0 %390
    %392 = vset.pattern.permute.xlu0 3
    %393 = vperm.xlu0 %392, %v346
    %v394 = vpop.permute.xlu0 %393
    %vm395 = vcmp.eq.s32.totalorder %v349, %v50
    %vm396 = vcmp.eq.s32.totalorder %v352, %v50
    %vm397 = vcmp.eq.s32.totalorder %v355, %v50
    %vm398 = vcmp.eq.s32.totalorder %v358, %v50
    %vm399 = vcmp.eq.s32.totalorder %v361, %v50
    %vm400 = vcmp.eq.s32.totalorder %v364, %v50
    %vm401 = vcmp.eq.s32.totalorder %v367, %v50
    %vm402 = vcmp.eq.s32.totalorder %v370, %v50
    %vm403 = vcmp.eq.s32.totalorder %v373, %v50
    %vm404 = vcmp.eq.s32.totalorder %v376, %v50
    %vm405 = vcmp.eq.s32.totalorder %v379, %v50
    %vm406 = vcmp.eq.s32.totalorder %v382, %v50
    %vm407 = vcmp.eq.s32.totalorder %v385, %v50
    %vm408 = vcmp.eq.s32.totalorder %v388, %v50
    %vm409 = vcmp.eq.s32.totalorder %v391, %v50
    %vm410 = vcmp.eq.s32.totalorder %v394, %v50
    %vm411 = vmor %vm313, %vm395
    %vm412 = vmor %vm314, %vm396
    %vm413 = vmor %vm315, %vm397
    %vm414 = vmor %vm316, %vm398
    %vm415 = vmor %vm317, %vm399
    %vm416 = vmor %vm318, %vm400
    %vm417 = vmor %vm319, %vm401
    %vm418 = vmor %vm320, %vm402
    %vm419 = vmor %vm321, %vm403
    %vm420 = vmor %vm322, %vm404
    %vm421 = vmor %vm323, %vm405
    %vm422 = vmor %vm324, %vm406
    %vm423 = vmor %vm325, %vm407
    %vm424 = vmor %vm326, %vm408
    %vm425 = vmor %vm327, %vm409
    %vm426 = vmor %vm328, %vm410
    %v428 = vlaneseq
    %v429 = vshrl.u32 %v428, 7
    %v430 = vsub.s32 0, %v429
    %v431 = vrot.slane %v48, %v430
    %v433 = vsel %vm411, %v431, 0.0
    %v434 = vsel %vm412, %v431, 0.0
    %v435 = vsel %vm413, %v431, 0.0
    %v436 = vsel %vm414, %v431, 0.0
    %v437 = vsel %vm415, %v431, 0.0
    %v438 = vsel %vm416, %v431, 0.0
    %v439 = vsel %vm417, %v431, 0.0
    %v440 = vsel %vm418, %v431, 0.0
    %v441 = vsel %vm419, %v431, 0.0
    %v442 = vsel %vm420, %v431, 0.0
    %v443 = vsel %vm421, %v431, 0.0
    %v444 = vsel %vm422, %v431, 0.0
    %v445 = vsel %vm423, %v431, 0.0
    %v446 = vsel %vm424, %v431, 0.0
    %v447 = vsel %vm425, %v431, 0.0
    %v448 = vsel %vm426, %v431, 0.0
    %449 = vadd.xlane.f32.xlu0 %v433
    %v450 = vpop.xlane.xlu0 %449
    %451 = vadd.xlane.f32.xlu0 %v434
    %v452 = vpop.xlane.xlu0 %451
    %453 = vadd.xlane.f32.xlu0 %v435
    %v454 = vpop.xlane.xlu0 %453
    %455 = vadd.xlane.f32.xlu0 %v436
    %v456 = vpop.xlane.xlu0 %455
    %457 = vadd.xlane.f32.xlu0 %v437
    %v458 = vpop.xlane.xlu0 %457
    %459 = vadd.xlane.f32.xlu0 %v438
    %v460 = vpop.xlane.xlu0 %459
    %461 = vadd.xlane.f32.xlu0 %v439
    %v462 = vpop.xlane.xlu0 %461
    %463 = vadd.xlane.f32.xlu0 %v440
    %v464 = vpop.xlane.xlu0 %463
    %465 = vadd.xlane.f32.xlu0 %v441
    %v466 = vpop.xlane.xlu0 %465
    %467 = vadd.xlane.f32.xlu0 %v442
    %v468 = vpop.xlane.xlu0 %467
    %469 = vadd.xlane.f32.xlu0 %v443
    %v470 = vpop.xlane.xlu0 %469
    %471 = vadd.xlane.f32.xlu0 %v444
    %v472 = vpop.xlane.xlu0 %471
    %473 = vadd.xlane.f32.xlu0 %v445
    %v474 = vpop.xlane.xlu0 %473
    %475 = vadd.xlane.f32.xlu0 %v446
    %v476 = vpop.xlane.xlu0 %475
    %477 = vadd.xlane.f32.xlu0 %v447
    %v478 = vpop.xlane.xlu0 %477
    %479 = vadd.xlane.f32.xlu0 %v448
    %v480 = vpop.xlane.xlu0 %479
    %s481 = sld [smem:[#allocation2]]
    %v482 = vstv %s481
    %v483 = vadd.f32 %v450, %v482
    %v484 = vadd.f32 %v452, %v482
    %v485 = vadd.f32 %v454, %v482
    %v486 = vadd.f32 %v456, %v482
    %v487 = vadd.f32 %v458, %v482
    %v488 = vadd.f32 %v460, %v482
    %v489 = vadd.f32 %v462, %v482
    %v490 = vadd.f32 %v464, %v482
    %v491 = vadd.f32 %v466, %v482
    %v492 = vadd.f32 %v468, %v482
    %v493 = vadd.f32 %v470, %v482
    %v494 = vadd.f32 %v472, %v482
    %v495 = vadd.f32 %v474, %v482
    %v496 = vadd.f32 %v476, %v482
    %v497 = vadd.f32 %v478, %v482
    %v498 = vadd.f32 %v480, %v482
    %v499 = vxor.u32 %v483, 2147483648
    %v500 = vxor.u32 %v484, 2147483648
    %v501 = vxor.u32 %v485, 2147483648
    %v502 = vxor.u32 %v486, 2147483648
    %v503 = vxor.u32 %v487, 2147483648
    %v504 = vxor.u32 %v488, 2147483648
    %v505 = vxor.u32 %v489, 2147483648
    %v506 = vxor.u32 %v490, 2147483648
    %v507 = vxor.u32 %v491, 2147483648
    %v508 = vxor.u32 %v492, 2147483648
    %v509 = vxor.u32 %v493, 2147483648
    %v510 = vxor.u32 %v494, 2147483648
    %v511 = vxor.u32 %v495, 2147483648
    %v512 = vxor.u32 %v496, 2147483648
    %v513 = vxor.u32 %v497, 2147483648
    %v514 = vxor.u32 %v498, 2147483648
    %v515 = vmul.f32 %v499, 1.442695
    %v516 = vpow.pop %v515
    %v517 = vmul.f32 %v500, 1.442695
    %v518 = vpow.pop %v517
    %v519 = vmul.f32 %v501, 1.442695
    %v520 = vpow.pop %v519
    %v521 = vmul.f32 %v502, 1.442695
    %v522 = vpow.pop %v521
    %v523 = vmul.f32 %v503, 1.442695
    %v524 = vpow.pop %v523
    %v525 = vmul.f32 %v504, 1.442695
    %v526 = vpow.pop %v525
    %v527 = vmul.f32 %v505, 1.442695
    %v528 = vpow.pop %v527
    %v529 = vmul.f32 %v506, 1.442695
    %v530 = vpow.pop %v529
    %v531 = vmul.f32 %v507, 1.442695
    %v532 = vpow.pop %v531
    %v533 = vmul.f32 %v508, 1.442695
    %v534 = vpow.pop %v533
    %v535 = vmul.f32 %v509, 1.442695
    %v536 = vpow.pop %v535
    %v537 = vmul.f32 %v510, 1.442695
    %v538 = vpow.pop %v537
    %v539 = vmul.f32 %v511, 1.442695
    %v540 = vpow.pop %v539
    %v541 = vmul.f32 %v512, 1.442695
    %v542 = vpow.pop %v541
    %v543 = vmul.f32 %v513, 1.442695
    %v544 = vpow.pop %v543
    %v545 = vmul.f32 %v514, 1.442695
    %v546 = vpow.pop %v545
    %v547 = vadd.f32 %v516, 1.0
    %v548 = vadd.f32 %v518, 1.0
    %v549 = vadd.f32 %v520, 1.0
    %v550 = vadd.f32 %v522, 1.0
    %v551 = vadd.f32 %v524, 1.0
    %v552 = vadd.f32 %v526, 1.0
    %v553 = vadd.f32 %v528, 1.0
    %v554 = vadd.f32 %v530, 1.0
    %v555 = vadd.f32 %v532, 1.0
    %v556 = vadd.f32 %v534, 1.0
    %v557 = vadd.f32 %v536, 1.0
    %v558 = vadd.f32 %v538, 1.0
    %v559 = vadd.f32 %v540, 1.0
    %v560 = vadd.f32 %v542, 1.0
    %v561 = vadd.f32 %v544, 1.0
    %v562 = vadd.f32 %v546, 1.0
    %v563 = vrcp.pop %v547
    %v564 = vmul.f32 1.0, %v563
    %v565 = vrcp.pop %v548
    %v566 = vmul.f32 1.0, %v565
    %v567 = vrcp.pop %v549
    %v568 = vmul.f32 1.0, %v567
    %v569 = vrcp.pop %v550
    %v570 = vmul.f32 1.0, %v569
    %v571 = vrcp.pop %v551
    %v572 = vmul.f32 1.0, %v571
    %v573 = vrcp.pop %v552
    %v574 = vmul.f32 1.0, %v573
    %v575 = vrcp.pop %v553
    %v576 = vmul.f32 1.0, %v575
    %v577 = vrcp.pop %v554
    %v578 = vmul.f32 1.0, %v577
    %v579 = vrcp.pop %v555
    %v580 = vmul.f32 1.0, %v579
    %v581 = vrcp.pop %v556
    %v582 = vmul.f32 1.0, %v581
    %v583 = vrcp.pop %v557
    %v584 = vmul.f32 1.0, %v583
    %v585 = vrcp.pop %v558
    %v586 = vmul.f32 1.0, %v585
    %v587 = vrcp.pop %v559
    %v588 = vmul.f32 1.0, %v587
    %v589 = vrcp.pop %v560
    %v590 = vmul.f32 1.0, %v589
    %v591 = vrcp.pop %v561
    %v592 = vmul.f32 1.0, %v591
    %v593 = vrcp.pop %v562
    %v594 = vmul.f32 1.0, %v593
    %595 = vxpose.xlu0.b32.start [1/16] %v564, 128
    %596 = vxpose.xlu0.b32.cont [2/16] %v566, 128
    %597 = vxpose.xlu0.b32.cont [3/16] %v568, 128
    %598 = vxpose.xlu0.b32.cont [4/16] %v570, 128
    %599 = vxpose.xlu0.b32.cont [5/16] %v572, 128
    %600 = vxpose.xlu0.b32.cont [6/16] %v574, 128
    %601 = vxpose.xlu0.b32.cont [7/16] %v576, 128
    %602 = vxpose.xlu0.b32.cont [8/16] %v578, 128
    %603 = vxpose.xlu0.b32.cont [9/16] %v580, 128
    %604 = vxpose.xlu0.b32.cont [10/16] %v582, 128
    %605 = vxpose.xlu0.b32.cont [11/16] %v584, 128
    %606 = vxpose.xlu0.b32.cont [12/16] %v586, 128
    %607 = vxpose.xlu0.b32.cont [13/16] %v588, 128
    %608 = vxpose.xlu0.b32.cont [14/16] %v590, 128
    %609 = vxpose.xlu0.b32.cont [15/16] %v592, 128
    %610 = vxpose.xlu0.b32.end [16/16] %v594, 128
    %v611 = vpop.trf.xlu0
    %v612 = vpop.trf.xlu0
    %v613 = vpop.trf.xlu0
    %v614 = vpop.trf.xlu0
    %v615 = vpop.trf.xlu0
    %v616 = vpop.trf.xlu0
    %v617 = vpop.trf.xlu0
    %v618 = vpop.trf.xlu0
    %v619 = vpop.trf.xlu0
    %v620 = vpop.trf.xlu0
    %v621 = vpop.trf.xlu0
    %v622 = vpop.trf.xlu0
    %v623 = vpop.trf.xlu0
    %v624 = vpop.trf.xlu0
    %v625 = vpop.trf.xlu0
    %v626 = vpop.trf.xlu0
    %627 = vst [vmem:[#allocation6] sm:$0x1] %v611
    // Predicated region
    $region22: #{tpu_custom_call.1} parent=1 // pred_check
      _
    $region23: #{tpu_custom_call.1} parent=1 // pred_check_branch
      %629 = sbr.rel (0) target = $region25
    $region24: #{tpu_custom_call.1} parent=1 // pred_region
      %s631 = ssub.s32 16, 16
      %632 = vsyncadd [#allocation4], %s631
      %s634 = sshll.u32 [#allocation6], 4
      %s635 = int_to_ptr.vmem [resolvable:$true] %s634
      %637 = dma.vmem_to_hbm [thread:$0]  %s635, 16, %s4, [#allocation4]
    $region25: #{tpu_custom_call.1} parent=1 // pred_fallthru
      _
    // Predicated region
    $region26: #{tpu_custom_call.1} parent=1 // pred_check
      _
    $region27: #{tpu_custom_call.1} parent=1 // pred_check_branch
      %639 = sbr.rel (0) target = $region29
    $region28: #{tpu_custom_call.1} parent=1 // pred_region
      %640 = dma.done [#allocation4], 16
    $region29: #{tpu_custom_call.1} parent=1 // pred_fallthru
      _
    %641 = vsyncpa [#allocation4], 1
    %642 = vsyncpa [#allocation5], 1

</llo_original>
